<compile_context>
chip_gen: v5e
topology: v5e:2x2
jax: 0.10.0
libtpu: 0.0.40
codegen_flags: <defaults>
</compile_context>

<pallas_src>
import functools

import jax
import jax.numpy as jnp
from jax.experimental import pallas as pl
from jax.experimental.pallas import tpu as pltpu


MAX_TILE_B = 256   # max batch rows per grid step (multiple of 8 sublanes)
O_PAD = 128        # lane-dense padded output width (multiple of 128 lanes)


def mnist_server_kernel(x_ref, w4t_ref, b4_ref, w2t_ref, b2_ref, o_ref):
    # linear4: h = x @ W4^T + b4  (f32 accumulation on the MXU)
    h = jnp.dot(x_ref[...], w4t_ref[...],
                preferred_element_type=jnp.float32) + b4_ref[...]
    # ReLU (VPU)
    h = jnp.maximum(h, 0.0)
    # linear2: logits = h @ W2t_pad + b2_pad  (padded cols have zero W/b)
    logits = jnp.dot(h, w2t_ref[...],
                     preferred_element_type=jnp.float32) + b2_ref[...]
    # Sigmoid epilogue (EUP). Padded lanes evaluate to sigmoid(0)=0.5 and are
    # sliced off outside the kernel before any consumer sees them.
    o_ref[...] = jax.nn.sigmoid(logits).astype(o_ref.dtype)


def prepare_params(w4, b4, w2, b2):
    """One-time parameter prep (NOT per forward call): transpose weights to
    [in, out] layout and zero-pad the output features to a lane-dense 128."""
    H = w4.shape[0]
    O = w2.shape[0]
    w4t = jnp.asarray(w4, jnp.float32).T                       # [H, H]
    b4r = jnp.asarray(b4, jnp.float32).reshape(1, H)           # [1, H]
    w2t_pad = jnp.zeros((H, O_PAD), jnp.float32).at[:, :O].set(
        jnp.asarray(w2, jnp.float32).T)                        # [H, 128]
    b2_pad = jnp.zeros((1, O_PAD), jnp.float32).at[0, :O].set(
        jnp.asarray(b2, jnp.float32))                          # [1, 128]
    return w4t, b4r, w2t_pad, b2_pad, O


@functools.partial(jax.jit, static_argnames=("out_size",))
def mnist_server_forward(xb, w4t, b4r, w2t_pad, b2_pad, *, out_size):
    """xb: [B, H] float32. Params must come from prepare_params()."""
    B, H = xb.shape

    # Adapt the batch tile: round small batches up to 8 sublanes instead of
    # paying for a full MAX_TILE_B tile; cap at MAX_TILE_B for large batches.
    tile_b = min(MAX_TILE_B, max(8, pl.cdiv(B, 8) * 8))
    B_pad = pl.cdiv(B, tile_b) * tile_b
    if B_pad != B:
        xb = jnp.pad(xb, ((0, B_pad - B), (0, 0)))

    out_pad = pl.pallas_call(
        mnist_server_kernel,
        out_shape=jax.ShapeDtypeStruct((B_pad, O_PAD), xb.dtype),
        grid=(B_pad // tile_b,),
        in_specs=[
            pl.BlockSpec((tile_b, H), lambda i: (i, 0)),   # x tile (pipelined)
            pl.BlockSpec((H, H), lambda i: (0, 0)),        # W4^T (resident)
            pl.BlockSpec((1, H), lambda i: (0, 0)),        # b4
            pl.BlockSpec((H, O_PAD), lambda i: (0, 0)),    # W2^T (lane-padded)
            pl.BlockSpec((1, O_PAD), lambda i: (0, 0)),    # b2 (lane-padded)
        ],
        out_specs=pl.BlockSpec((tile_b, O_PAD), lambda i: (i, 0)),
        compiler_params=pltpu.CompilerParams(
            dimension_semantics=("parallel",)),
    )(xb, w4t, b4r, w2t_pad, b2_pad)

    # Drop batch padding and the zero-weighted lane padding.
    return out_pad[:B, :out_size]


def init_params(key, hidden_size, out_size):
    """Deterministic init mirroring nn.Linear shapes (uniform +/- 1/sqrt(fan_in))."""
    k1, k2, k3, k4 = jax.random.split(key, 4)
    bound = 1.0 / jnp.sqrt(hidden_size)
    w4 = jax.random.uniform(k1, (hidden_size, hidden_size), jnp.float32,
                            -bound, bound)
    b4 = jax.random.uniform(k2, (hidden_size,), jnp.float32, -bound, bound)
    w2 = jax.random.uniform(k3, (out_size, hidden_size), jnp.float32,
                            -bound, bound)
    b2 = jax.random.uniform(k4, (out_size,), jnp.float32, -bound, bound)
    return w4, b4, w2, b2


if __name__ == "__main__":
    key = jax.random.PRNGKey(0)
    k_x, k_p = jax.random.split(key)

    batch = 256          # batch-oriented head: many rows amortize launch/DMA
    hidden_size = 32
    out_size = 10        # MNIST classes

    xb = jax.random.normal(k_x, (batch, hidden_size), jnp.float32)
    w4, b4, w2, b2 = init_params(k_p, hidden_size, out_size)

    # One-time parameter prep (transpose + lane padding), outside the hot path.
    w4t, b4r, w2t_pad, b2_pad, O = prepare_params(w4, b4, w2, b2)

    out = mnist_server_forward(xb, w4t, b4r, w2t_pad, b2_pad, out_size=O)
    out = jax.block_until_ready(out)

    # Reference check in plain JAX (same semantics as the PyTorch forward).
    ref = jax.nn.sigmoid(jnp.maximum(xb @ w4.T + b4, 0.0) @ w2.T + b2)
    assert out.shape == (batch, out_size)
    assert jnp.allclose(out, ref, atol=1e-5, rtol=1e-5)

    print("KERNEL_OK")
</pallas_src>

<mosaic_0001>
module attributes {stable_mosaic.version = 11 : i64} {
  func.func @mnist_server_kernel(%arg0: i32, %arg1: memref<256x32xf32, #tpu.memory_space<vmem>>, %arg2: memref<32x32xf32, #tpu.memory_space<vmem>>, %arg3: memref<1x32xf32, #tpu.memory_space<vmem>>, %arg4: memref<32x128xf32, #tpu.memory_space<vmem>>, %arg5: memref<1x128xf32, #tpu.memory_space<vmem>>, %arg6: memref<256x128xf32, #tpu.memory_space<vmem>>) attributes {dimension_semantics = [#tpu.dimension_semantics<parallel>], iteration_bounds = array<i64: 1>, scalar_prefetch = 0 : i64, scratch_operands = 0 : i64, tpu.core_type = #tpu.core_type<tc>, window_params = [{transform_indices = @transform_0, window_bounds = array<i64: 256, 32>}, {pipeline_mode = #tpu.pipeline_mode<synchronous>, transform_indices = @transform_1, window_bounds = array<i64: 32, 32>}, {pipeline_mode = #tpu.pipeline_mode<synchronous>, transform_indices = @transform_2, window_bounds = array<i64: 1, 32>}, {pipeline_mode = #tpu.pipeline_mode<synchronous>, transform_indices = @transform_3, window_bounds = array<i64: 32, 128>}, {pipeline_mode = #tpu.pipeline_mode<synchronous>, transform_indices = @transform_4, window_bounds = array<i64: 1, 128>}, {transform_indices = @transform_5, window_bounds = array<i64: 256, 128>}]} {
    %c0 = arith.constant 0 : index
    %c0_0 = arith.constant 0 : index
    %0 = vector.load %arg1[%c0, %c0_0] : memref<256x32xf32, #tpu.memory_space<vmem>>, vector<256x32xf32>
    %c0_1 = arith.constant 0 : index
    %c0_2 = arith.constant 0 : index
    %1 = vector.load %arg2[%c0_1, %c0_2] : memref<32x32xf32, #tpu.memory_space<vmem>>, vector<32x32xf32>
    %cst = arith.constant dense<0.000000e+00> : vector<256x32xf32>
    %2 = tpu.matmul %0, %1, %cst {dimension_numbers = #tpu.dot_dimension_numbers<[1], [0], [0], [1], [0, 0, 1, 1], [], []>} : vector<256x32xf32>, vector<32x32xf32>, vector<256x32xf32> -> vector<256x32xf32>
    %c0_3 = arith.constant 0 : index
    %c0_4 = arith.constant 0 : index
    %3 = vector.load %arg3[%c0_3, %c0_4] : memref<1x32xf32, #tpu.memory_space<vmem>>, vector<1x32xf32>
    %4 = vector.broadcast %3 : vector<1x32xf32> to vector<256x32xf32>
    %5 = arith.addf %2, %4 : vector<256x32xf32>
    %cst_5 = arith.constant 0.000000e+00 : f32
    %6 = vector.broadcast %cst_5 : f32 to vector<256x32xf32>
    %7 = arith.maximumf %5, %6 : vector<256x32xf32>
    %c0_6 = arith.constant 0 : index
    %c0_7 = arith.constant 0 : index
    %8 = vector.load %arg4[%c0_6, %c0_7] : memref<32x128xf32, #tpu.memory_space<vmem>>, vector<32x128xf32>
    %cst_8 = arith.constant dense<0.000000e+00> : vector<256x128xf32>
    %9 = tpu.matmul %7, %8, %cst_8 {dimension_numbers = #tpu.dot_dimension_numbers<[1], [0], [0], [1], [0, 0, 1, 1], [], []>} : vector<256x32xf32>, vector<32x128xf32>, vector<256x128xf32> -> vector<256x128xf32>
    %c0_9 = arith.constant 0 : index
    %c0_10 = arith.constant 0 : index
    %10 = vector.load %arg5[%c0_9, %c0_10] : memref<1x128xf32, #tpu.memory_space<vmem>>, vector<1x128xf32>
    %11 = vector.broadcast %10 : vector<1x128xf32> to vector<256x128xf32>
    %12 = arith.addf %9, %11 : vector<256x128xf32>
    %13 = arith.negf %12 : vector<256x128xf32>
    %14 = math.exp %13 : vector<256x128xf32>
    %cst_11 = arith.constant 1.000000e+00 : f32
    %15 = vector.broadcast %cst_11 : f32 to vector<256x128xf32>
    %16 = arith.addf %15, %14 : vector<256x128xf32>
    %17 = arith.divf %15, %16 : vector<256x128xf32>
    %c0_12 = arith.constant 0 : index
    %c0_13 = arith.constant 0 : index
    %18 = vector.load %arg6[%c0_12, %c0_13] : memref<256x128xf32, #tpu.memory_space<vmem>>, vector<256x128xf32>
    tpu.vector_store %arg6[%c0_12, %c0_13], %17 {strides = array<i32>} : memref<256x128xf32, #tpu.memory_space<vmem>>, vector<256x128xf32>,
    return
  }
  func.func @transform_0(%arg0: i32) -> (i32, i32) {
    %c0_i32 = arith.constant 0 : i32
    %c0_i32_0 = arith.constant 0 : i32
    return %arg0, %c0_i32 : i32, i32
  }
  func.func @transform_1(%arg0: i32) -> (i32, i32) {
    %c0_i32 = arith.constant 0 : i32
    %c0_i32_0 = arith.constant 0 : i32
    %c0_i32_1 = arith.constant 0 : i32
    return %c0_i32, %c0_i32_0 : i32, i32
  }
  func.func @transform_2(%arg0: i32) -> (i32, i32) {
    %c0_i32 = arith.constant 0 : i32
    %c0_i32_0 = arith.constant 0 : i32
    %c0_i32_1 = arith.constant 0 : i32
    return %c0_i32, %c0_i32_0 : i32, i32
  }
  func.func @transform_3(%arg0: i32) -> (i32, i32) {
    %c0_i32 = arith.constant 0 : i32
    %c0_i32_0 = arith.constant 0 : i32
    %c0_i32_1 = arith.constant 0 : i32
    return %c0_i32, %c0_i32_0 : i32, i32
  }
  func.func @transform_4(%arg0: i32) -> (i32, i32) {
    %c0_i32 = arith.constant 0 : i32
    %c0_i32_0 = arith.constant 0 : i32
    %c0_i32_1 = arith.constant 0 : i32
    return %c0_i32, %c0_i32_0 : i32, i32
  }
  func.func @transform_5(%arg0: i32) -> (i32, i32) {
    %c0_i32 = arith.constant 0 : i32
    %c0_i32_0 = arith.constant 0 : i32
    return %arg0, %c0_i32 : i32, i32
  }
}

</mosaic_0001>

<llo_original>
// kernel: mnist_server_forward.1
$region0: #{mnist_server_forward.1}
  #allocation0 [shape = 'u32[]', space=smem, size = 0x4, offset = 0x4, fixed_abs, tag = 'smem constant byte address 0x4 - core index']
  #allocation1 [shape = 'u32[72,128]{1,0:T(1,128)}', space=vmem, size = 0x9000, scoped, tag = 'internal scratch']
  %s0 = inlined_call_operand.vmem [shape: f32[256,32], index: 0, kind: input, shape index: {}]
  %s1 = inlined_call_operand.vmem [shape: f32[32,32], index: 1, kind: input, shape index: {}]
  %s2 = inlined_call_operand.vmem [shape: f32[1,32], index: 2, kind: input, shape index: {}]
  %s3 = inlined_call_operand.vmem [shape: f32[32,128], index: 3, kind: input, shape index: {}]
  %s4 = inlined_call_operand.vmem [shape: f32[1,128], index: 4, kind: input, shape index: {}]
  %s5 = inlined_call_operand.vmem [shape: f32[256,128], index: 5, kind: output, shape index: {}]
  %s6 = sld [smem:[#allocation0]]
  $region30: #{mnist_server_forward.1} parent=0
    _
  %s8 = ssub.s32 1, %s6
  %s9 = scalar_select 0, %s8, %s6
  // Predicated region
  $region2: #{mnist_server_forward.1} parent=0 // pred_check
    _
  $region3: #{mnist_server_forward.1} parent=0 // pred_check_branch
    %11 = sbr.rel (0) target = $region5
  $region4: #{mnist_server_forward.1} parent=0 // pred_region
    _
  $region5: #{mnist_server_forward.1} parent=0 // pred_fallthru
    _
  // Predicated region
  $region6: #{mnist_server_forward.1} parent=0 // pred_check
    _
  $region7: #{mnist_server_forward.1} parent=0 // pred_check_branch
    %13 = sbr.rel (0) target = $region9
  $region8: #{mnist_server_forward.1} parent=0 // pred_region
    _
  $region9: #{mnist_server_forward.1} parent=0 // pred_fallthru
    _
  // Predicated region
  $region10: #{mnist_server_forward.1} parent=0 // pred_check
    _
  $region11: #{mnist_server_forward.1} parent=0 // pred_check_branch
    %15 = sbr.rel (0) target = $region13
  $region12: #{mnist_server_forward.1} parent=0 // pred_region
    _
  $region13: #{mnist_server_forward.1} parent=0 // pred_fallthru
    _
  // Predicated region
  $region14: #{mnist_server_forward.1} parent=0 // pred_check
    _
  $region15: #{mnist_server_forward.1} parent=0 // pred_check_branch
    %17 = sbr.rel (0) target = $region17
  $region16: #{mnist_server_forward.1} parent=0 // pred_region
    _
  $region17: #{mnist_server_forward.1} parent=0 // pred_fallthru
    _
  // Predicated region
  $region18: #{mnist_server_forward.1} parent=0 // pred_check
    _
  $region19: #{mnist_server_forward.1} parent=0 // pred_check_branch
    %19 = sbr.rel (0) target = $region21
  $region20: #{mnist_server_forward.1} parent=0 // pred_region
    _
  $region21: #{mnist_server_forward.1} parent=0 // pred_fallthru
    _
  %v20 = vld [vmem:[%s0] sm:$0xff]
  %v21 = vld [vmem:[%s0 + $0x8] sm:$0xff]
  %v22 = vld [vmem:[%s0 + $0x10] sm:$0xff]
  %v23 = vld [vmem:[%s0 + $0x18] sm:$0xff]
  %v24 = vld [vmem:[%s0 + $0x20] sm:$0xff]
  %v25 = vld [vmem:[%s0 + $0x28] sm:$0xff]
  %v26 = vld [vmem:[%s0 + $0x30] sm:$0xff]
  %v27 = vld [vmem:[%s0 + $0x38] sm:$0xff]
  %v28 = vld [vmem:[%s0 + $0x40] sm:$0xff]
  %v29 = vld [vmem:[%s0 + $0x48] sm:$0xff]
  %v30 = vld [vmem:[%s0 + $0x50] sm:$0xff]
  %v31 = vld [vmem:[%s0 + $0x58] sm:$0xff]
  %v32 = vld [vmem:[%s0 + $0x60] sm:$0xff]
  %v33 = vld [vmem:[%s0 + $0x68] sm:$0xff]
  %v34 = vld [vmem:[%s0 + $0x70] sm:$0xff]
  %v35 = vld [vmem:[%s0 + $0x78] sm:$0xff]
  %v36 = vld [vmem:[%s0 + $0x80] sm:$0xff]
  %v37 = vld [vmem:[%s0 + $0x88] sm:$0xff]
  %v38 = vld [vmem:[%s0 + $0x90] sm:$0xff]
  %v39 = vld [vmem:[%s0 + $0x98] sm:$0xff]
  %v40 = vld [vmem:[%s0 + $0xa0] sm:$0xff]
  %v41 = vld [vmem:[%s0 + $0xa8] sm:$0xff]
  %v42 = vld [vmem:[%s0 + $0xb0] sm:$0xff]
  %v43 = vld [vmem:[%s0 + $0xb8] sm:$0xff]
  %v44 = vld [vmem:[%s0 + $0xc0] sm:$0xff]
  %v45 = vld [vmem:[%s0 + $0xc8] sm:$0xff]
  %v46 = vld [vmem:[%s0 + $0xd0] sm:$0xff]
  %v47 = vld [vmem:[%s0 + $0xd8] sm:$0xff]
  %v48 = vld [vmem:[%s0 + $0xe0] sm:$0xff]
  %v49 = vld [vmem:[%s0 + $0xe8] sm:$0xff]
  %v50 = vld [vmem:[%s0 + $0xf0] sm:$0xff]
  %v51 = vld [vmem:[%s0 + $0xf8] sm:$0xff]
  %v52 = vld [vmem:[%s1] sm:$0xff]
  %v53 = vld [vmem:[%s1 + $0x8] sm:$0xff]
  %v54 = vld [vmem:[%s1 + $0x10] sm:$0xff]
  %v55 = vld [vmem:[%s1 + $0x18] sm:$0xff]
  %v56 = vld [vmem:[%s2] sm:$0x1]
  %v58 = vperm.slane %v56, 0
  %vm60 = vcmask 261120
  %v62 = vsel %vm60, %v20, 0
  %v65 = vsel %vm60, %v21, 0
  %v68 = vsel %vm60, %v22, 0
  %v71 = vsel %vm60, %v23, 0
  %v74 = vsel %vm60, %v24, 0
  %v77 = vsel %vm60, %v25, 0
  %v80 = vsel %vm60, %v26, 0
  %v83 = vsel %vm60, %v27, 0
  %v86 = vsel %vm60, %v28, 0
  %v89 = vsel %vm60, %v29, 0
  %v92 = vsel %vm60, %v30, 0
  %v95 = vsel %vm60, %v31, 0
  %v98 = vsel %vm60, %v32, 0
  %v101 = vsel %vm60, %v33, 0
  %v104 = vsel %vm60, %v34, 0
  %v107 = vsel %vm60, %v35, 0
  %v110 = vsel %vm60, %v36, 0
  %v113 = vsel %vm60, %v37, 0
  %v116 = vsel %vm60, %v38, 0
  %v119 = vsel %vm60, %v39, 0
  %v122 = vsel %vm60, %v40, 0
  %v125 = vsel %vm60, %v41, 0
  %v128 = vsel %vm60, %v42, 0
  %v131 = vsel %vm60, %v43, 0
  %v134 = vsel %vm60, %v44, 0
  %v137 = vsel %vm60, %v45, 0
  %v140 = vsel %vm60, %v46, 0
  %v143 = vsel %vm60, %v47, 0
  %v146 = vsel %vm60, %v48, 0
  %v149 = vsel %vm60, %v49, 0
  %v152 = vsel %vm60, %v50, 0
  %v155 = vsel %vm60, %v51, 0
  %157 = vmatpush.msra.mxu0 0.0
  %158 = vmatpush.msra.mxu0 0.0
  %159 = vmatpush.msra.mxu0 0.0
  %160 = vmatpush.msra.mxu0 0.0
  %161 = vmatpush.msra.mxu0 0.0
  %162 = vmatpush.msra.mxu0 0.0
  %163 = vmatpush.msra.mxu0 0.0
  %164 = vmatpush.msra.mxu0 0.0
  %165 = vmatpush.msra.mxu0 0.0
  %166 = vmatpush.msra.mxu0 0.0
  %167 = vmatpush.msra.mxu0 0.0
  %168 = vmatpush.msra.mxu0 0.0
  %169 = vmatpush.msra.mxu0 %v55
  %170 = vmatpush.msra.mxu0 %v54
  %171 = vmatpush.msra.mxu0 %v53
  %172 = vmatpush.msra.mxu0 %v52
  %173 = vmatmul.f32.gmra.mxu0 %v62
  %v174 = vpop.f32.mrf.mxu0
  %v175 = vadd.f32 %v58, %v174
  %176 = vmatmul.f32.gmra.mxu0 %v65
  %v177 = vpop.f32.mrf.mxu0
  %v178 = vadd.f32 %v58, %v177
  %179 = vmatmul.f32.gmra.mxu0 %v68
  %v180 = vpop.f32.mrf.mxu0
  %v181 = vadd.f32 %v58, %v180
  %182 = vmatmul.f32.gmra.mxu0 %v71
  %v183 = vpop.f32.mrf.mxu0
  %v184 = vadd.f32 %v58, %v183
  %185 = vmatmul.f32.gmra.mxu0 %v74
  %v186 = vpop.f32.mrf.mxu0
  %v187 = vadd.f32 %v58, %v186
  %188 = vmatmul.f32.gmra.mxu0 %v77
  %v189 = vpop.f32.mrf.mxu0
  %v190 = vadd.f32 %v58, %v189
  %191 = vmatmul.f32.gmra.mxu0 %v80
  %v192 = vpop.f32.mrf.mxu0
  %v193 = vadd.f32 %v58, %v192
  %194 = vmatmul.f32.gmra.mxu0 %v83
  %v195 = vpop.f32.mrf.mxu0
  %v196 = vadd.f32 %v58, %v195
  %197 = vmatmul.f32.gmra.mxu0 %v86
  %v198 = vpop.f32.mrf.mxu0
  %v199 = vadd.f32 %v58, %v198
  %200 = vmatmul.f32.gmra.mxu0 %v89
  %v201 = vpop.f32.mrf.mxu0
  %v202 = vadd.f32 %v58, %v201
  %203 = vmatmul.f32.gmra.mxu0 %v92
  %v204 = vpop.f32.mrf.mxu0
  %v205 = vadd.f32 %v58, %v204
  %206 = vmatmul.f32.gmra.mxu0 %v95
  %v207 = vpop.f32.mrf.mxu0
  %v208 = vadd.f32 %v58, %v207
  %209 = vmatmul.f32.gmra.mxu0 %v98
  %v210 = vpop.f32.mrf.mxu0
  %v211 = vadd.f32 %v58, %v210
  %212 = vmatmul.f32.gmra.mxu0 %v101
  %v213 = vpop.f32.mrf.mxu0
  %v214 = vadd.f32 %v58, %v213
  %215 = vmatmul.f32.gmra.mxu0 %v104
  %v216 = vpop.f32.mrf.mxu0
  %v217 = vadd.f32 %v58, %v216
  %218 = vmatmul.f32.gmra.mxu0 %v107
  %v219 = vpop.f32.mrf.mxu0
  %v220 = vadd.f32 %v58, %v219
  %221 = vmatmul.f32.gmra.mxu0 %v110
  %v222 = vpop.f32.mrf.mxu0
  %v223 = vadd.f32 %v58, %v222
  %224 = vmatmul.f32.gmra.mxu0 %v113
  %v225 = vpop.f32.mrf.mxu0
  %v226 = vadd.f32 %v58, %v225
  %227 = vmatmul.f32.gmra.mxu0 %v116
  %v228 = vpop.f32.mrf.mxu0
  %v229 = vadd.f32 %v58, %v228
  %230 = vmatmul.f32.gmra.mxu0 %v119
  %v231 = vpop.f32.mrf.mxu0
  %v232 = vadd.f32 %v58, %v231
  %233 = vmatmul.f32.gmra.mxu0 %v122
  %v234 = vpop.f32.mrf.mxu0
  %v235 = vadd.f32 %v58, %v234
  %236 = vmatmul.f32.gmra.mxu0 %v125
  %v237 = vpop.f32.mrf.mxu0
  %v238 = vadd.f32 %v58, %v237
  %239 = vmatmul.f32.gmra.mxu0 %v128
  %v240 = vpop.f32.mrf.mxu0
  %v241 = vadd.f32 %v58, %v240
  %242 = vmatmul.f32.gmra.mxu0 %v131
  %v243 = vpop.f32.mrf.mxu0
  %v244 = vadd.f32 %v58, %v243
  %245 = vmatmul.f32.gmra.mxu0 %v134
  %v246 = vpop.f32.mrf.mxu0
  %v247 = vadd.f32 %v58, %v246
  %248 = vmatmul.f32.gmra.mxu0 %v137
  %v249 = vpop.f32.mrf.mxu0
  %v250 = vadd.f32 %v58, %v249
  %251 = vmatmul.f32.gmra.mxu0 %v140
  %v252 = vpop.f32.mrf.mxu0
  %v253 = vadd.f32 %v58, %v252
  %254 = vmatmul.f32.gmra.mxu0 %v143
  %v255 = vpop.f32.mrf.mxu0
  %v256 = vadd.f32 %v58, %v255
  %257 = vmatmul.f32.gmra.mxu0 %v146
  %v258 = vpop.f32.mrf.mxu0
  %v259 = vadd.f32 %v58, %v258
  %260 = vmatmul.f32.gmra.mxu0 %v149
  %v261 = vpop.f32.mrf.mxu0
  %v262 = vadd.f32 %v58, %v261
  %263 = vmatmul.f32.gmra.mxu0 %v152
  %v264 = vpop.f32.mrf.mxu0
  %v265 = vadd.f32 %v58, %v264
  %266 = vmatmul.f32.gmra.mxu0 %v155
  %v267 = vpop.f32.mrf.mxu0
  %v268 = vadd.f32 %v58, %v267
  %269 = vdwg.mxu0
  %v270 = vmax.f32 %v175, 0.0
  %v271 = vmax.f32 %v178, 0.0
  %v272 = vmax.f32 %v181, 0.0
  %v273 = vmax.f32 %v184, 0.0
  %v274 = vmax.f32 %v187, 0.0
  %v275 = vmax.f32 %v190, 0.0
  %v276 = vmax.f32 %v193, 0.0
  %v277 = vmax.f32 %v196, 0.0
  %v278 = vmax.f32 %v199, 0.0
  %v279 = vmax.f32 %v202, 0.0
  %v280 = vmax.f32 %v205, 0.0
  %v281 = vmax.f32 %v208, 0.0
  %v282 = vmax.f32 %v211, 0.0
  %v283 = vmax.f32 %v214, 0.0
  %v284 = vmax.f32 %v217, 0.0
  %v285 = vmax.f32 %v220, 0.0
  %v286 = vmax.f32 %v223, 0.0
  %v287 = vmax.f32 %v226, 0.0
  %v288 = vmax.f32 %v229, 0.0
  %v289 = vmax.f32 %v232, 0.0
  %v290 = vmax.f32 %v235, 0.0
  %v291 = vmax.f32 %v238, 0.0
  %v292 = vmax.f32 %v241, 0.0
  %v293 = vmax.f32 %v244, 0.0
  %v294 = vmax.f32 %v247, 0.0
  %v295 = vmax.f32 %v250, 0.0
  %v296 = vmax.f32 %v253, 0.0
  %v297 = vmax.f32 %v256, 0.0
  %v298 = vmax.f32 %v259, 0.0
  %v299 = vmax.f32 %v262, 0.0
  %v300 = vmax.f32 %v265, 0.0
  %v301 = vmax.f32 %v268, 0.0
  %v302 = vld [vmem:[%s3] sm:$0xff]
  %v303 = vld [vmem:[%s3 + $0x8] sm:$0xff]
  %v304 = vld [vmem:[%s3 + $0x10] sm:$0xff]
  %v305 = vld [vmem:[%s3 + $0x18] sm:$0xff]
  %v306 = vld [vmem:[%s4] sm:$0x1]
  %v308 = vperm.slane %v306, 0
  %v311 = vsel %vm60, %v270, 0
  %v314 = vsel %vm60, %v271, 0
  %v317 = vsel %vm60, %v272, 0
  %v320 = vsel %vm60, %v273, 0
  %v323 = vsel %vm60, %v274, 0
  %v326 = vsel %vm60, %v275, 0
  %v329 = vsel %vm60, %v276, 0
  %v332 = vsel %vm60, %v277, 0
  %v335 = vsel %vm60, %v278, 0
  %v338 = vsel %vm60, %v279, 0
  %v341 = vsel %vm60, %v280, 0
  %v344 = vsel %vm60, %v281, 0
  %v347 = vsel %vm60, %v282, 0
  %v350 = vsel %vm60, %v283, 0
  %v353 = vsel %vm60, %v284, 0
  %v356 = vsel %vm60, %v285, 0
  %v359 = vsel %vm60, %v286, 0
  %v362 = vsel %vm60, %v287, 0
  %v365 = vsel %vm60, %v288, 0
  %v368 = vsel %vm60, %v289, 0
  %v371 = vsel %vm60, %v290, 0
  %v374 = vsel %vm60, %v291, 0
  %v377 = vsel %vm60, %v292, 0
  %v380 = vsel %vm60, %v293, 0
  %v383 = vsel %vm60, %v294, 0
  %v386 = vsel %vm60, %v295, 0
  %v389 = vsel %vm60, %v296, 0
  %v392 = vsel %vm60, %v297, 0
  %v395 = vsel %vm60, %v298, 0
  %v398 = vsel %vm60, %v299, 0
  %v401 = vsel %vm60, %v300, 0
  %v404 = vsel %vm60, %v301, 0
  %406 = vmatpush.msra.mxu0 0.0
  %407 = vmatpush.msra.mxu0 0.0
  %408 = vmatpush.msra.mxu0 0.0
  %409 = vmatpush.msra.mxu0 0.0
  %410 = vmatpush.msra.mxu0 0.0
  %411 = vmatpush.msra.mxu0 0.0
  %412 = vmatpush.msra.mxu0 0.0
  %413 = vmatpush.msra.mxu0 0.0
  %414 = vmatpush.msra.mxu0 0.0
  %415 = vmatpush.msra.mxu0 0.0
  %416 = vmatpush.msra.mxu0 0.0
  %417 = vmatpush.msra.mxu0 0.0
  %418 = vmatpush.msra.mxu0 %v305
  %419 = vmatpush.msra.mxu0 %v304
  %420 = vmatpush.msra.mxu0 %v303
  %421 = vmatpush.msra.mxu0 %v302
  %422 = vmatmul.f32.gmra.mxu0 %v311
  %v423 = vpop.f32.mrf.mxu0
  %v424 = vadd.f32 %v308, %v423
  %425 = vmatmul.f32.gmra.mxu0 %v314
  %v426 = vpop.f32.mrf.mxu0
  %v427 = vadd.f32 %v308, %v426
  %428 = vmatmul.f32.gmra.mxu0 %v317
  %v429 = vpop.f32.mrf.mxu0
  %v430 = vadd.f32 %v308, %v429
  %431 = vmatmul.f32.gmra.mxu0 %v320
  %v432 = vpop.f32.mrf.mxu0
  %v433 = vadd.f32 %v308, %v432
  %434 = vmatmul.f32.gmra.mxu0 %v323
  %v435 = vpop.f32.mrf.mxu0
  %v436 = vadd.f32 %v308, %v435
  %437 = vmatmul.f32.gmra.mxu0 %v326
  %v438 = vpop.f32.mrf.mxu0
  %v439 = vadd.f32 %v308, %v438
  %440 = vmatmul.f32.gmra.mxu0 %v329
  %v441 = vpop.f32.mrf.mxu0
  %v442 = vadd.f32 %v308, %v441
  %443 = vmatmul.f32.gmra.mxu0 %v332
  %v444 = vpop.f32.mrf.mxu0
  %v445 = vadd.f32 %v308, %v444
  %446 = vmatmul.f32.gmra.mxu0 %v335
  %v447 = vpop.f32.mrf.mxu0
  %v448 = vadd.f32 %v308, %v447
  %449 = vmatmul.f32.gmra.mxu0 %v338
  %v450 = vpop.f32.mrf.mxu0
  %v451 = vadd.f32 %v308, %v450
  %452 = vmatmul.f32.gmra.mxu0 %v341
  %v453 = vpop.f32.mrf.mxu0
  %v454 = vadd.f32 %v308, %v453
  %455 = vmatmul.f32.gmra.mxu0 %v344
  %v456 = vpop.f32.mrf.mxu0
  %v457 = vadd.f32 %v308, %v456
  %458 = vmatmul.f32.gmra.mxu0 %v347
  %v459 = vpop.f32.mrf.mxu0
  %v460 = vadd.f32 %v308, %v459
  %461 = vmatmul.f32.gmra.mxu0 %v350
  %v462 = vpop.f32.mrf.mxu0
  %v463 = vadd.f32 %v308, %v462
  %464 = vmatmul.f32.gmra.mxu0 %v353
  %v465 = vpop.f32.mrf.mxu0
  %v466 = vadd.f32 %v308, %v465
  %467 = vmatmul.f32.gmra.mxu0 %v356
  %v468 = vpop.f32.mrf.mxu0
  %v469 = vadd.f32 %v308, %v468
  %470 = vmatmul.f32.gmra.mxu0 %v359
  %v471 = vpop.f32.mrf.mxu0
  %v472 = vadd.f32 %v308, %v471
  %473 = vmatmul.f32.gmra.mxu0 %v362
  %v474 = vpop.f32.mrf.mxu0
  %v475 = vadd.f32 %v308, %v474
  %476 = vmatmul.f32.gmra.mxu0 %v365
  %v477 = vpop.f32.mrf.mxu0
  %v478 = vadd.f32 %v308, %v477
  %479 = vmatmul.f32.gmra.mxu0 %v368
  %v480 = vpop.f32.mrf.mxu0
  %v481 = vadd.f32 %v308, %v480
  %482 = vmatmul.f32.gmra.mxu0 %v371
  %v483 = vpop.f32.mrf.mxu0
  %v484 = vadd.f32 %v308, %v483
  %485 = vmatmul.f32.gmra.mxu0 %v374
  %v486 = vpop.f32.mrf.mxu0
  %v487 = vadd.f32 %v308, %v486
  %488 = vmatmul.f32.gmra.mxu0 %v377
  %v489 = vpop.f32.mrf.mxu0
  %v490 = vadd.f32 %v308, %v489
  %491 = vmatmul.f32.gmra.mxu0 %v380
  %v492 = vpop.f32.mrf.mxu0
  %v493 = vadd.f32 %v308, %v492
  %494 = vmatmul.f32.gmra.mxu0 %v383
  %v495 = vpop.f32.mrf.mxu0
  %v496 = vadd.f32 %v308, %v495
  %497 = vmatmul.f32.gmra.mxu0 %v386
  %v498 = vpop.f32.mrf.mxu0
  %v499 = vadd.f32 %v308, %v498
  %500 = vmatmul.f32.gmra.mxu0 %v389
  %v501 = vpop.f32.mrf.mxu0
  %v502 = vadd.f32 %v308, %v501
  %503 = vmatmul.f32.gmra.mxu0 %v392
  %v504 = vpop.f32.mrf.mxu0
  %v505 = vadd.f32 %v308, %v504
  %506 = vmatmul.f32.gmra.mxu0 %v395
  %v507 = vpop.f32.mrf.mxu0
  %v508 = vadd.f32 %v308, %v507
  %509 = vmatmul.f32.gmra.mxu0 %v398
  %v510 = vpop.f32.mrf.mxu0
  %v511 = vadd.f32 %v308, %v510
  %512 = vmatmul.f32.gmra.mxu0 %v401
  %v513 = vpop.f32.mrf.mxu0
  %v514 = vadd.f32 %v308, %v513
  %515 = vmatmul.f32.gmra.mxu0 %v404
  %v516 = vpop.f32.mrf.mxu0
  %v517 = vadd.f32 %v308, %v516
  %518 = vdwg.mxu0
  %v519 = vxor.u32 %v424, 2147483648
  %v520 = vxor.u32 %v427, 2147483648
  %v521 = vxor.u32 %v430, 2147483648
  %v522 = vxor.u32 %v433, 2147483648
  %v523 = vxor.u32 %v436, 2147483648
  %v524 = vxor.u32 %v439, 2147483648
  %v525 = vxor.u32 %v442, 2147483648
  %v526 = vxor.u32 %v445, 2147483648
  %v527 = vxor.u32 %v448, 2147483648
  %v528 = vxor.u32 %v451, 2147483648
  %v529 = vxor.u32 %v454, 2147483648
  %v530 = vxor.u32 %v457, 2147483648
  %v531 = vxor.u32 %v460, 2147483648
  %v532 = vxor.u32 %v463, 2147483648
  %v533 = vxor.u32 %v466, 2147483648
  %v534 = vxor.u32 %v469, 2147483648
  %v535 = vxor.u32 %v472, 2147483648
  %v536 = vxor.u32 %v475, 2147483648
  %v537 = vxor.u32 %v478, 2147483648
  %v538 = vxor.u32 %v481, 2147483648
  %v539 = vxor.u32 %v484, 2147483648
  %v540 = vxor.u32 %v487, 2147483648
  %v541 = vxor.u32 %v490, 2147483648
  %v542 = vxor.u32 %v493, 2147483648
  %v543 = vxor.u32 %v496, 2147483648
  %v544 = vxor.u32 %v499, 2147483648
  %v545 = vxor.u32 %v502, 2147483648
  %v546 = vxor.u32 %v505, 2147483648
  %v547 = vxor.u32 %v508, 2147483648
  %v548 = vxor.u32 %v511, 2147483648
  %v549 = vxor.u32 %v514, 2147483648
  %v550 = vxor.u32 %v517, 2147483648
  %v551 = vmul.f32 %v519, 1.442695
  %v552 = vpow.pop %v551
  %v553 = vmul.f32 %v520, 1.442695
  %v554 = vpow.pop %v553
  %v555 = vmul.f32 %v521, 1.442695
  %v556 = vpow.pop %v555
  %v557 = vmul.f32 %v522, 1.442695
  %v558 = vpow.pop %v557
  %v559 = vmul.f32 %v523, 1.442695
  %v560 = vpow.pop %v559
  %v561 = vmul.f32 %v524, 1.442695
  %v562 = vpow.pop %v561
  %v563 = vmul.f32 %v525, 1.442695
  %v564 = vpow.pop %v563
  %v565 = vmul.f32 %v526, 1.442695
  %v566 = vpow.pop %v565
  %v567 = vmul.f32 %v527, 1.442695
  %v568 = vpow.pop %v567
  %v569 = vmul.f32 %v528, 1.442695
  %v570 = vpow.pop %v569
  %v571 = vmul.f32 %v529, 1.442695
  %v572 = vpow.pop %v571
  %v573 = vmul.f32 %v530, 1.442695
  %v574 = vpow.pop %v573
  %v575 = vmul.f32 %v531, 1.442695
  %v576 = vpow.pop %v575
  %v577 = vmul.f32 %v532, 1.442695
  %v578 = vpow.pop %v577
  %v579 = vmul.f32 %v533, 1.442695
  %v580 = vpow.pop %v579
  %v581 = vmul.f32 %v534, 1.442695
  %v582 = vpow.pop %v581
  %v583 = vmul.f32 %v535, 1.442695
  %v584 = vpow.pop %v583
  %v585 = vmul.f32 %v536, 1.442695
  %v586 = vpow.pop %v585
  %v587 = vmul.f32 %v537, 1.442695
  %v588 = vpow.pop %v587
  %v589 = vmul.f32 %v538, 1.442695
  %v590 = vpow.pop %v589
  %v591 = vmul.f32 %v539, 1.442695
  %v592 = vpow.pop %v591
  %v593 = vmul.f32 %v540, 1.442695
  %v594 = vpow.pop %v593
  %v595 = vmul.f32 %v541, 1.442695
  %v596 = vpow.pop %v595
  %v597 = vmul.f32 %v542, 1.442695
  %v598 = vpow.pop %v597
  %v599 = vmul.f32 %v543, 1.442695
  %v600 = vpow.pop %v599
  %v601 = vmul.f32 %v544, 1.442695
  %v602 = vpow.pop %v601
  %v603 = vmul.f32 %v545, 1.442695
  %v604 = vpow.pop %v603
  %v605 = vmul.f32 %v546, 1.442695
  %v606 = vpow.pop %v605
  %v607 = vmul.f32 %v547, 1.442695
  %v608 = vpow.pop %v607
  %v609 = vmul.f32 %v548, 1.442695
  %v610 = vpow.pop %v609
  %v611 = vmul.f32 %v549, 1.442695
  %v612 = vpow.pop %v611
  %v613 = vmul.f32 %v550, 1.442695
  %v614 = vpow.pop %v613
  %v615 = vadd.f32 %v552, 1.0
  %v616 = vadd.f32 %v554, 1.0
  %v617 = vadd.f32 %v556, 1.0
  %v618 = vadd.f32 %v558, 1.0
  %v619 = vadd.f32 %v560, 1.0
  %v620 = vadd.f32 %v562, 1.0
  %v621 = vadd.f32 %v564, 1.0
  %v622 = vadd.f32 %v566, 1.0
  %v623 = vadd.f32 %v568, 1.0
  %v624 = vadd.f32 %v570, 1.0
  %v625 = vadd.f32 %v572, 1.0
  %v626 = vadd.f32 %v574, 1.0
  %v627 = vadd.f32 %v576, 1.0
  %v628 = vadd.f32 %v578, 1.0
  %v629 = vadd.f32 %v580, 1.0
  %v630 = vadd.f32 %v582, 1.0
  %v631 = vadd.f32 %v584, 1.0
  %v632 = vadd.f32 %v586, 1.0
  %v633 = vadd.f32 %v588, 1.0
  %v634 = vadd.f32 %v590, 1.0
  %v635 = vadd.f32 %v592, 1.0
  %v636 = vadd.f32 %v594, 1.0
  %v637 = vadd.f32 %v596, 1.0
  %v638 = vadd.f32 %v598, 1.0
  %v639 = vadd.f32 %v600, 1.0
  %v640 = vadd.f32 %v602, 1.0
  %v641 = vadd.f32 %v604, 1.0
  %v642 = vadd.f32 %v606, 1.0
  %v643 = vadd.f32 %v608, 1.0
  %v644 = vadd.f32 %v610, 1.0
  %v645 = vadd.f32 %v612, 1.0
  %v646 = vadd.f32 %v614, 1.0
  %v647 = vrcp.pop %v615
  %v648 = vmul.f32 %v615, %v647
  %v649 = vsub.f32 1.0, %v648
  %v650 = vmul.f32 %v647, %v649
  %v651 = vadd.f32 %v647, %v650
  %vm652 = vweird.f32 %v615
  %vm653 = vweird.f32 %v647
  %vm654 = vmor %vm652, %vm653
  %v655 = vsel %vm654, %v647, %v651
  %v656 = vand.u32 2147483647, %v615
  %vm657 = vcmp.eq.f32.partialorder %v656, 8.507059e+37
  %v658 = vand.u32 %v615, 2147483648
  %v659 = vor.u32 1.1754944e-38, %v658
  %v660 = vsel %vm657, %v659, %v655
  %v661 = vmul.f32 1.0, %v660
  %v662 = vrcp.pop %v616
  %v663 = vmul.f32 %v616, %v662
  %v664 = vsub.f32 1.0, %v663
  %v665 = vmul.f32 %v662, %v664
  %v666 = vadd.f32 %v662, %v665
  %vm667 = vweird.f32 %v616
  %vm668 = vweird.f32 %v662
  %vm669 = vmor %vm667, %vm668
  %v670 = vsel %vm669, %v662, %v666
  %v671 = vand.u32 2147483647, %v616
  %vm672 = vcmp.eq.f32.partialorder %v671, 8.507059e+37
  %v673 = vand.u32 %v616, 2147483648
  %v674 = vor.u32 1.1754944e-38, %v673
  %v675 = vsel %vm672, %v674, %v670
  %v676 = vmul.f32 1.0, %v675
  %v677 = vrcp.pop %v617
  %v678 = vmul.f32 %v617, %v677
  %v679 = vsub.f32 1.0, %v678
  %v680 = vmul.f32 %v677, %v679
  %v681 = vadd.f32 %v677, %v680
  %vm682 = vweird.f32 %v617
  %vm683 = vweird.f32 %v677
  %vm684 = vmor %vm682, %vm683
  %v685 = vsel %vm684, %v677, %v681
  %v686 = vand.u32 2147483647, %v617
  %vm687 = vcmp.eq.f32.partialorder %v686, 8.507059e+37
  %v688 = vand.u32 %v617, 2147483648
  %v689 = vor.u32 1.1754944e-38, %v688
  %v690 = vsel %vm687, %v689, %v685
  %v691 = vmul.f32 1.0, %v690
  %v692 = vrcp.pop %v618
  %v693 = vmul.f32 %v618, %v692
  %v694 = vsub.f32 1.0, %v693
  %v695 = vmul.f32 %v692, %v694
  %v696 = vadd.f32 %v692, %v695
  %vm697 = vweird.f32 %v618
  %vm698 = vweird.f32 %v692
  %vm699 = vmor %vm697, %vm698
  %v700 = vsel %vm699, %v692, %v696
  %v701 = vand.u32 2147483647, %v618
  %vm702 = vcmp.eq.f32.partialorder %v701, 8.507059e+37
  %v703 = vand.u32 %v618, 2147483648
  %v704 = vor.u32 1.1754944e-38, %v703
  %v705 = vsel %vm702, %v704, %v700
  %v706 = vmul.f32 1.0, %v705
  %v707 = vrcp.pop %v619
  %v708 = vmul.f32 %v619, %v707
  %v709 = vsub.f32 1.0, %v708
  %v710 = vmul.f32 %v707, %v709
  %v711 = vadd.f32 %v707, %v710
  %vm712 = vweird.f32 %v619
  %vm713 = vweird.f32 %v707
  %vm714 = vmor %vm712, %vm713
  %v715 = vsel %vm714, %v707, %v711
  %v716 = vand.u32 2147483647, %v619
  %vm717 = vcmp.eq.f32.partialorder %v716, 8.507059e+37
  %v718 = vand.u32 %v619, 2147483648
  %v719 = vor.u32 1.1754944e-38, %v718
  %v720 = vsel %vm717, %v719, %v715
  %v721 = vmul.f32 1.0, %v720
  %v722 = vrcp.pop %v620
  %v723 = vmul.f32 %v620, %v722
  %v724 = vsub.f32 1.0, %v723
  %v725 = vmul.f32 %v722, %v724
  %v726 = vadd.f32 %v722, %v725
  %vm727 = vweird.f32 %v620
  %vm728 = vweird.f32 %v722
  %vm729 = vmor %vm727, %vm728
  %v730 = vsel %vm729, %v722, %v726
  %v731 = vand.u32 2147483647, %v620
  %vm732 = vcmp.eq.f32.partialorder %v731, 8.507059e+37
  %v733 = vand.u32 %v620, 2147483648
  %v734 = vor.u32 1.1754944e-38, %v733
  %v735 = vsel %vm732, %v734, %v730
  %v736 = vmul.f32 1.0, %v735
  %v737 = vrcp.pop %v621
  %v738 = vmul.f32 %v621, %v737
  %v739 = vsub.f32 1.0, %v738
  %v740 = vmul.f32 %v737, %v739
  %v741 = vadd.f32 %v737, %v740
  %vm742 = vweird.f32 %v621
  %vm743 = vweird.f32 %v737
  %vm744 = vmor %vm742, %vm743
  %v745 = vsel %vm744, %v737, %v741
  %v746 = vand.u32 2147483647, %v621
  %vm747 = vcmp.eq.f32.partialorder %v746, 8.507059e+37
  %v748 = vand.u32 %v621, 2147483648
  %v749 = vor.u32 1.1754944e-38, %v748
  %v750 = vsel %vm747, %v749, %v745
  %v751 = vmul.f32 1.0, %v750
  %v752 = vrcp.pop %v622
  %v753 = vmul.f32 %v622, %v752
  %v754 = vsub.f32 1.0, %v753
  %v755 = vmul.f32 %v752, %v754
  %v756 = vadd.f32 %v752, %v755
  %vm757 = vweird.f32 %v622
  %vm758 = vweird.f32 %v752
  %vm759 = vmor %vm757, %vm758
  %v760 = vsel %vm759, %v752, %v756
  %v761 = vand.u32 2147483647, %v622
  %vm762 = vcmp.eq.f32.partialorder %v761, 8.507059e+37
  %v763 = vand.u32 %v622, 2147483648
  %v764 = vor.u32 1.1754944e-38, %v763
  %v765 = vsel %vm762, %v764, %v760
  %v766 = vmul.f32 1.0, %v765
  %v767 = vrcp.pop %v623
  %v768 = vmul.f32 %v623, %v767
  %v769 = vsub.f32 1.0, %v768
  %v770 = vmul.f32 %v767, %v769
  %v771 = vadd.f32 %v767, %v770
  %vm772 = vweird.f32 %v623
  %vm773 = vweird.f32 %v767
  %vm774 = vmor %vm772, %vm773
  %v775 = vsel %vm774, %v767, %v771
  %v776 = vand.u32 2147483647, %v623
  %vm777 = vcmp.eq.f32.partialorder %v776, 8.507059e+37
  %v778 = vand.u32 %v623, 2147483648
  %v779 = vor.u32 1.1754944e-38, %v778
  %v780 = vsel %vm777, %v779, %v775
  %v781 = vmul.f32 1.0, %v780
  %v782 = vrcp.pop %v624
  %v783 = vmul.f32 %v624, %v782
  %v784 = vsub.f32 1.0, %v783
  %v785 = vmul.f32 %v782, %v784
  %v786 = vadd.f32 %v782, %v785
  %vm787 = vweird.f32 %v624
  %vm788 = vweird.f32 %v782
  %vm789 = vmor %vm787, %vm788
  %v790 = vsel %vm789, %v782, %v786
  %v791 = vand.u32 2147483647, %v624
  %vm792 = vcmp.eq.f32.partialorder %v791, 8.507059e+37
  %v793 = vand.u32 %v624, 2147483648
  %v794 = vor.u32 1.1754944e-38, %v793
  %v795 = vsel %vm792, %v794, %v790
  %v796 = vmul.f32 1.0, %v795
  %v797 = vrcp.pop %v625
  %v798 = vmul.f32 %v625, %v797
  %v799 = vsub.f32 1.0, %v798
  %v800 = vmul.f32 %v797, %v799
  %v801 = vadd.f32 %v797, %v800
  %vm802 = vweird.f32 %v625
  %vm803 = vweird.f32 %v797
  %vm804 = vmor %vm802, %vm803
  %v805 = vsel %vm804, %v797, %v801
  %v806 = vand.u32 2147483647, %v625
  %vm807 = vcmp.eq.f32.partialorder %v806, 8.507059e+37
  %v808 = vand.u32 %v625, 2147483648
  %v809 = vor.u32 1.1754944e-38, %v808
  %v810 = vsel %vm807, %v809, %v805
  %v811 = vmul.f32 1.0, %v810
  %v812 = vrcp.pop %v626
  %v813 = vmul.f32 %v626, %v812
  %v814 = vsub.f32 1.0, %v813
  %v815 = vmul.f32 %v812, %v814
  %v816 = vadd.f32 %v812, %v815
  %vm817 = vweird.f32 %v626
  %vm818 = vweird.f32 %v812
  %vm819 = vmor %vm817, %vm818
  %v820 = vsel %vm819, %v812, %v816
  %v821 = vand.u32 2147483647, %v626
  %vm822 = vcmp.eq.f32.partialorder %v821, 8.507059e+37
  %v823 = vand.u32 %v626, 2147483648
  %v824 = vor.u32 1.1754944e-38, %v823
  %v825 = vsel %vm822, %v824, %v820
  %v826 = vmul.f32 1.0, %v825
  %v827 = vrcp.pop %v627
  %v828 = vmul.f32 %v627, %v827
  %v829 = vsub.f32 1.0, %v828
  %v830 = vmul.f32 %v827, %v829
  %v831 = vadd.f32 %v827, %v830
  %vm832 = vweird.f32 %v627
  %vm833 = vweird.f32 %v827
  %vm834 = vmor %vm832, %vm833
  %v835 = vsel %vm834, %v827, %v831
  %v836 = vand.u32 2147483647, %v627
  %vm837 = vcmp.eq.f32.partialorder %v836, 8.507059e+37
  %v838 = vand.u32 %v627, 2147483648
  %v839 = vor.u32 1.1754944e-38, %v838
  %v840 = vsel %vm837, %v839, %v835
  %v841 = vmul.f32 1.0, %v840
  %v842 = vrcp.pop %v628
  %v843 = vmul.f32 %v628, %v842
  %v844 = vsub.f32 1.0, %v843
  %v845 = vmul.f32 %v842, %v844
  %v846 = vadd.f32 %v842, %v845
  %vm847 = vweird.f32 %v628
  %vm848 = vweird.f32 %v842
  %vm849 = vmor %vm847, %vm848
  %v850 = vsel %vm849, %v842, %v846
  %v851 = vand.u32 2147483647, %v628
  %vm852 = vcmp.eq.f32.partialorder %v851, 8.507059e+37
  %v853 = vand.u32 %v628, 2147483648
  %v854 = vor.u32 1.1754944e-38, %v853
  %v855 = vsel %vm852, %v854, %v850
  %v856 = vmul.f32 1.0, %v855
  %v857 = vrcp.pop %v629
  %v858 = vmul.f32 %v629, %v857
  %v859 = vsub.f32 1.0, %v858
  %v860 = vmul.f32 %v857, %v859
  %v861 = vadd.f32 %v857, %v860
  %vm862 = vweird.f32 %v629
  %vm863 = vweird.f32 %v857
  %vm864 = vmor %vm862, %vm863
  %v865 = vsel %vm864, %v857, %v861
  %v866 = vand.u32 2147483647, %v629
  %vm867 = vcmp.eq.f32.partialorder %v866, 8.507059e+37
  %v868 = vand.u32 %v629, 2147483648
  %v869 = vor.u32 1.1754944e-38, %v868
  %v870 = vsel %vm867, %v869, %v865
  %v871 = vmul.f32 1.0, %v870
  %v872 = vrcp.pop %v630
  %v873 = vmul.f32 %v630, %v872
  %v874 = vsub.f32 1.0, %v873
  %v875 = vmul.f32 %v872, %v874
  %v876 = vadd.f32 %v872, %v875
  %vm877 = vweird.f32 %v630
  %vm878 = vweird.f32 %v872
  %vm879 = vmor %vm877, %vm878
  %v880 = vsel %vm879, %v872, %v876
  %v881 = vand.u32 2147483647, %v630
  %vm882 = vcmp.eq.f32.partialorder %v881, 8.507059e+37
  %v883 = vand.u32 %v630, 2147483648
  %v884 = vor.u32 1.1754944e-38, %v883
  %v885 = vsel %vm882, %v884, %v880
  %v886 = vmul.f32 1.0, %v885
  %v887 = vrcp.pop %v631
  %v888 = vmul.f32 %v631, %v887
  %v889 = vsub.f32 1.0, %v888
  %v890 = vmul.f32 %v887, %v889
  %v891 = vadd.f32 %v887, %v890
  %vm892 = vweird.f32 %v631
  %vm893 = vweird.f32 %v887
  %vm894 = vmor %vm892, %vm893
  %v895 = vsel %vm894, %v887, %v891
  %v896 = vand.u32 2147483647, %v631
  %vm897 = vcmp.eq.f32.partialorder %v896, 8.507059e+37
  %v898 = vand.u32 %v631, 2147483648
  %v899 = vor.u32 1.1754944e-38, %v898
  %v900 = vsel %vm897, %v899, %v895
  %v901 = vmul.f32 1.0, %v900
  %v902 = vrcp.pop %v632
  %v903 = vmul.f32 %v632, %v902
  %v904 = vsub.f32 1.0, %v903
  %v905 = vmul.f32 %v902, %v904
  %v906 = vadd.f32 %v902, %v905
  %vm907 = vweird.f32 %v632
  %vm908 = vweird.f32 %v902
  %vm909 = vmor %vm907, %vm908
  %v910 = vsel %vm909, %v902, %v906
  %v911 = vand.u32 2147483647, %v632
  %vm912 = vcmp.eq.f32.partialorder %v911, 8.507059e+37
  %v913 = vand.u32 %v632, 2147483648
  %v914 = vor.u32 1.1754944e-38, %v913
  %v915 = vsel %vm912, %v914, %v910
  %v916 = vmul.f32 1.0, %v915
  %v917 = vrcp.pop %v633
  %v918 = vmul.f32 %v633, %v917
  %v919 = vsub.f32 1.0, %v918
  %v920 = vmul.f32 %v917, %v919
  %v921 = vadd.f32 %v917, %v920
  %vm922 = vweird.f32 %v633
  %vm923 = vweird.f32 %v917
  %vm924 = vmor %vm922, %vm923
  %v925 = vsel %vm924, %v917, %v921
  %v926 = vand.u32 2147483647, %v633
  %vm927 = vcmp.eq.f32.partialorder %v926, 8.507059e+37
  %v928 = vand.u32 %v633, 2147483648
  %v929 = vor.u32 1.1754944e-38, %v928
  %v930 = vsel %vm927, %v929, %v925
  %v931 = vmul.f32 1.0, %v930
  %v932 = vrcp.pop %v634
  %v933 = vmul.f32 %v634, %v932
  %v934 = vsub.f32 1.0, %v933
  %v935 = vmul.f32 %v932, %v934
  %v936 = vadd.f32 %v932, %v935
  %vm937 = vweird.f32 %v634
  %vm938 = vweird.f32 %v932
  %vm939 = vmor %vm937, %vm938
  %v940 = vsel %vm939, %v932, %v936
  %v941 = vand.u32 2147483647, %v634
  %vm942 = vcmp.eq.f32.partialorder %v941, 8.507059e+37
  %v943 = vand.u32 %v634, 2147483648
  %v944 = vor.u32 1.1754944e-38, %v943
  %v945 = vsel %vm942, %v944, %v940
  %v946 = vmul.f32 1.0, %v945
  %v947 = vrcp.pop %v635
  %v948 = vmul.f32 %v635, %v947
  %v949 = vsub.f32 1.0, %v948
  %v950 = vmul.f32 %v947, %v949
  %v951 = vadd.f32 %v947, %v950
  %vm952 = vweird.f32 %v635
  %vm953 = vweird.f32 %v947
  %vm954 = vmor %vm952, %vm953
  %v955 = vsel %vm954, %v947, %v951
  %v956 = vand.u32 2147483647, %v635
  %vm957 = vcmp.eq.f32.partialorder %v956, 8.507059e+37
  %v958 = vand.u32 %v635, 2147483648
  %v959 = vor.u32 1.1754944e-38, %v958
  %v960 = vsel %vm957, %v959, %v955
  %v961 = vmul.f32 1.0, %v960
  %v962 = vrcp.pop %v636
  %v963 = vmul.f32 %v636, %v962
  %v964 = vsub.f32 1.0, %v963
  %v965 = vmul.f32 %v962, %v964
  %v966 = vadd.f32 %v962, %v965
  %vm967 = vweird.f32 %v636
  %vm968 = vweird.f32 %v962
  %vm969 = vmor %vm967, %vm968
  %v970 = vsel %vm969, %v962, %v966
  %v971 = vand.u32 2147483647, %v636
  %vm972 = vcmp.eq.f32.partialorder %v971, 8.507059e+37
  %v973 = vand.u32 %v636, 2147483648
  %v974 = vor.u32 1.1754944e-38, %v973
  %v975 = vsel %vm972, %v974, %v970
  %v976 = vmul.f32 1.0, %v975
  %v977 = vrcp.pop %v637
  %v978 = vmul.f32 %v637, %v977
  %v979 = vsub.f32 1.0, %v978
  %v980 = vmul.f32 %v977, %v979
  %v981 = vadd.f32 %v977, %v980
  %vm982 = vweird.f32 %v637
  %vm983 = vweird.f32 %v977
  %vm984 = vmor %vm982, %vm983
  %v985 = vsel %vm984, %v977, %v981
  %v986 = vand.u32 2147483647, %v637
  %vm987 = vcmp.eq.f32.partialorder %v986, 8.507059e+37
  %v988 = vand.u32 %v637, 2147483648
  %v989 = vor.u32 1.1754944e-38, %v988
  %v990 = vsel %vm987, %v989, %v985
  %v991 = vmul.f32 1.0, %v990
  %v992 = vrcp.pop %v638
  %v993 = vmul.f32 %v638, %v992
  %v994 = vsub.f32 1.0, %v993
  %v995 = vmul.f32 %v992, %v994
  %v996 = vadd.f32 %v992, %v995
  %vm997 = vweird.f32 %v638
  %vm998 = vweird.f32 %v992
  %vm999 = vmor %vm997, %vm998
  %v1000 = vsel %vm999, %v992, %v996
  %v1001 = vand.u32 2147483647, %v638
  %vm1002 = vcmp.eq.f32.partialorder %v1001, 8.507059e+37
  %v1003 = vand.u32 %v638, 2147483648
  %v1004 = vor.u32 1.1754944e-38, %v1003
  %v1005 = vsel %vm1002, %v1004, %v1000
  %v1006 = vmul.f32 1.0, %v1005
  %v1007 = vrcp.pop %v639
  %v1008 = vmul.f32 %v639, %v1007
  %v1009 = vsub.f32 1.0, %v1008
  %v1010 = vmul.f32 %v1007, %v1009
  %v1011 = vadd.f32 %v1007, %v1010
  %vm1012 = vweird.f32 %v639
  %vm1013 = vweird.f32 %v1007
  %vm1014 = vmor %vm1012, %vm1013
  %v1015 = vsel %vm1014, %v1007, %v1011
  %v1016 = vand.u32 2147483647, %v639
  %vm1017 = vcmp.eq.f32.partialorder %v1016, 8.507059e+37
  %v1018 = vand.u32 %v639, 2147483648
  %v1019 = vor.u32 1.1754944e-38, %v1018
  %v1020 = vsel %vm1017, %v1019, %v1015
  %v1021 = vmul.f32 1.0, %v1020
  %v1022 = vrcp.pop %v640
  %v1023 = vmul.f32 %v640, %v1022
  %v1024 = vsub.f32 1.0, %v1023
  %v1025 = vmul.f32 %v1022, %v1024
  %v1026 = vadd.f32 %v1022, %v1025
  %vm1027 = vweird.f32 %v640
  %vm1028 = vweird.f32 %v1022
  %vm1029 = vmor %vm1027, %vm1028
  %v1030 = vsel %vm1029, %v1022, %v1026
  %v1031 = vand.u32 2147483647, %v640
  %vm1032 = vcmp.eq.f32.partialorder %v1031, 8.507059e+37
  %v1033 = vand.u32 %v640, 2147483648
  %v1034 = vor.u32 1.1754944e-38, %v1033
  %v1035 = vsel %vm1032, %v1034, %v1030
  %v1036 = vmul.f32 1.0, %v1035
  %v1037 = vrcp.pop %v641
  %v1038 = vmul.f32 %v641, %v1037
  %v1039 = vsub.f32 1.0, %v1038
  %v1040 = vmul.f32 %v1037, %v1039
  %v1041 = vadd.f32 %v1037, %v1040
  %vm1042 = vweird.f32 %v641
  %vm1043 = vweird.f32 %v1037
  %vm1044 = vmor %vm1042, %vm1043
  %v1045 = vsel %vm1044, %v1037, %v1041
  %v1046 = vand.u32 2147483647, %v641
  %vm1047 = vcmp.eq.f32.partialorder %v1046, 8.507059e+37
  %v1048 = vand.u32 %v641, 2147483648
  %v1049 = vor.u32 1.1754944e-38, %v1048
  %v1050 = vsel %vm1047, %v1049, %v1045
  %v1051 = vmul.f32 1.0, %v1050
  %v1052 = vrcp.pop %v642
  %v1053 = vmul.f32 %v642, %v1052
  %v1054 = vsub.f32 1.0, %v1053
  %v1055 = vmul.f32 %v1052, %v1054
  %v1056 = vadd.f32 %v1052, %v1055
  %vm1057 = vweird.f32 %v642
  %vm1058 = vweird.f32 %v1052
  %vm1059 = vmor %vm1057, %vm1058
  %v1060 = vsel %vm1059, %v1052, %v1056
  %v1061 = vand.u32 2147483647, %v642
  %vm1062 = vcmp.eq.f32.partialorder %v1061, 8.507059e+37
  %v1063 = vand.u32 %v642, 2147483648
  %v1064 = vor.u32 1.1754944e-38, %v1063
  %v1065 = vsel %vm1062, %v1064, %v1060
  %v1066 = vmul.f32 1.0, %v1065
  %v1067 = vrcp.pop %v643
  %v1068 = vmul.f32 %v643, %v1067
  %v1069 = vsub.f32 1.0, %v1068
  %v1070 = vmul.f32 %v1067, %v1069
  %v1071 = vadd.f32 %v1067, %v1070
  %vm1072 = vweird.f32 %v643
  %vm1073 = vweird.f32 %v1067
  %vm1074 = vmor %vm1072, %vm1073
  %v1075 = vsel %vm1074, %v1067, %v1071
  %v1076 = vand.u32 2147483647, %v643
  %vm1077 = vcmp.eq.f32.partialorder %v1076, 8.507059e+37
  %v1078 = vand.u32 %v643, 2147483648
  %v1079 = vor.u32 1.1754944e-38, %v1078
  %v1080 = vsel %vm1077, %v1079, %v1075
  %v1081 = vmul.f32 1.0, %v1080
  %v1082 = vrcp.pop %v644
  %v1083 = vmul.f32 %v644, %v1082
  %v1084 = vsub.f32 1.0, %v1083
  %v1085 = vmul.f32 %v1082, %v1084
  %v1086 = vadd.f32 %v1082, %v1085
  %vm1087 = vweird.f32 %v644
  %vm1088 = vweird.f32 %v1082
  %vm1089 = vmor %vm1087, %vm1088
  %v1090 = vsel %vm1089, %v1082, %v1086
  %v1091 = vand.u32 2147483647, %v644
  %vm1092 = vcmp.eq.f32.partialorder %v1091, 8.507059e+37
  %v1093 = vand.u32 %v644, 2147483648
  %v1094 = vor.u32 1.1754944e-38, %v1093
  %v1095 = vsel %vm1092, %v1094, %v1090
  %v1096 = vmul.f32 1.0, %v1095
  %v1097 = vrcp.pop %v645
  %v1098 = vmul.f32 %v645, %v1097
  %v1099 = vsub.f32 1.0, %v1098
  %v1100 = vmul.f32 %v1097, %v1099
  %v1101 = vadd.f32 %v1097, %v1100
  %vm1102 = vweird.f32 %v645
  %vm1103 = vweird.f32 %v1097
  %vm1104 = vmor %vm1102, %vm1103
  %v1105 = vsel %vm1104, %v1097, %v1101
  %v1106 = vand.u32 2147483647, %v645
  %vm1107 = vcmp.eq.f32.partialorder %v1106, 8.507059e+37
  %v1108 = vand.u32 %v645, 2147483648
  %v1109 = vor.u32 1.1754944e-38, %v1108
  %v1110 = vsel %vm1107, %v1109, %v1105
  %v1111 = vmul.f32 1.0, %v1110
  %v1112 = vrcp.pop %v646
  %v1113 = vmul.f32 %v646, %v1112
  %v1114 = vsub.f32 1.0, %v1113
  %v1115 = vmul.f32 %v1112, %v1114
  %v1116 = vadd.f32 %v1112, %v1115
  %vm1117 = vweird.f32 %v646
  %vm1118 = vweird.f32 %v1112
  %vm1119 = vmor %vm1117, %vm1118
  %v1120 = vsel %vm1119, %v1112, %v1116
  %v1121 = vand.u32 2147483647, %v646
  %vm1122 = vcmp.eq.f32.partialorder %v1121, 8.507059e+37
  %v1123 = vand.u32 %v646, 2147483648
  %v1124 = vor.u32 1.1754944e-38, %v1123
  %v1125 = vsel %vm1122, %v1124, %v1120
  %v1126 = vmul.f32 1.0, %v1125
  %1127 = vst [vmem:[%s5] sm:$0xff] %v661
  %1128 = vst [vmem:[%s5 + $0x8] sm:$0xff] %v676
  %1129 = vst [vmem:[%s5 + $0x10] sm:$0xff] %v691
  %1130 = vst [vmem:[%s5 + $0x18] sm:$0xff] %v706
  %1131 = vst [vmem:[%s5 + $0x20] sm:$0xff] %v721
  %1132 = vst [vmem:[%s5 + $0x28] sm:$0xff] %v736
  %1133 = vst [vmem:[%s5 + $0x30] sm:$0xff] %v751
  %1134 = vst [vmem:[%s5 + $0x38] sm:$0xff] %v766
  %1135 = vst [vmem:[%s5 + $0x40] sm:$0xff] %v781
  %1136 = vst [vmem:[%s5 + $0x48] sm:$0xff] %v796
  %1137 = vst [vmem:[%s5 + $0x50] sm:$0xff] %v811
  %1138 = vst [vmem:[%s5 + $0x58] sm:$0xff] %v826
  %1139 = vst [vmem:[%s5 + $0x60] sm:$0xff] %v841
  %1140 = vst [vmem:[%s5 + $0x68] sm:$0xff] %v856
  %1141 = vst [vmem:[%s5 + $0x70] sm:$0xff] %v871
  %1142 = vst [vmem:[%s5 + $0x78] sm:$0xff] %v886
  %1143 = vst [vmem:[%s5 + $0x80] sm:$0xff] %v901
  %1144 = vst [vmem:[%s5 + $0x88] sm:$0xff] %v916
  %1145 = vst [vmem:[%s5 + $0x90] sm:$0xff] %v931
  %1146 = vst [vmem:[%s5 + $0x98] sm:$0xff] %v946
  %1147 = vst [vmem:[%s5 + $0xa0] sm:$0xff] %v961
  %1148 = vst [vmem:[%s5 + $0xa8] sm:$0xff] %v976
  %1149 = vst [vmem:[%s5 + $0xb0] sm:$0xff] %v991
  %1150 = vst [vmem:[%s5 + $0xb8] sm:$0xff] %v1006
  %1151 = vst [vmem:[%s5 + $0xc0] sm:$0xff] %v1021
  %1152 = vst [vmem:[%s5 + $0xc8] sm:$0xff] %v1036
  %1153 = vst [vmem:[%s5 + $0xd0] sm:$0xff] %v1051
  %1154 = vst [vmem:[%s5 + $0xd8] sm:$0xff] %v1066
  %1155 = vst [vmem:[%s5 + $0xe0] sm:$0xff] %v1081
  %1156 = vst [vmem:[%s5 + $0xe8] sm:$0xff] %v1096
  %1157 = vst [vmem:[%s5 + $0xf0] sm:$0xff] %v1111
  %1158 = vst [vmem:[%s5 + $0xf8] sm:$0xff] %v1126
  // Predicated region
  $region22: #{mnist_server_forward.1} parent=0 // pred_check
    _
  $region23: #{mnist_server_forward.1} parent=0 // pred_check_branch
    %1160 = sbr.rel (0) target = $region25
  $region24: #{mnist_server_forward.1} parent=0 // pred_region
    _
  $region25: #{mnist_server_forward.1} parent=0 // pred_fallthru
    _
  // Predicated region
  $region26: #{mnist_server_forward.1} parent=0 // pred_check
    _
  $region27: #{mnist_server_forward.1} parent=0 // pred_check_branch
    %1162 = sbr.rel (0) target = $region29
  $region28: #{mnist_server_forward.1} parent=0 // pred_region
    _
  $region29: #{mnist_server_forward.1} parent=0 // pred_fallthru
    _

</llo_original>
